<compile_context>
chip_gen: v7x
topology: tpu7x:2x2x1
jax: 0.10.0
libtpu: 0.0.40
codegen_flags: <defaults>
</compile_context>

<pallas_src>
import functools
import math

import jax
import jax.numpy as jnp
from jax.experimental import pallas as pl
from jax.experimental.pallas import tpu as pltpu


# --------------------------- config (small, synthetic) ----------------------
BATCH = 2
SEQ = 8
HIDDEN = 32
NUM_HEADS = 4
LAYER_NORM_EPS = 1e-12


# --------------------------- shared math helpers ----------------------------
def _layer_norm(x, gamma, beta, eps):
    mu = jnp.mean(x, axis=-1, keepdims=True)
    var = jnp.mean((x - mu) ** 2, axis=-1, keepdims=True)
    return (x - mu) * jax.lax.rsqrt(var + eps) * gamma + beta


# --------------------------- Pallas kernel: BertAttention -------------------
def bert_attention_kernel(
    x_ref,                      # (batch_tile*seq, H)   activations for this tile
    wqkv_ref, bqkv_ref,         # (H, 3H) bf16 (Q block pre-scaled), (1, 3H) f32
    wo_ref, bo_ref,             # (H, H) bf16, (1, H) f32
    ln_g_ref, ln_b_ref,         # (1, H) f32
    out_ref,                    # (batch_tile*seq, H)
    *, batch_tile, seq, num_heads, head_dim, eps,
):
    f32 = jnp.float32
    bf16 = jnp.bfloat16
    hidden = num_heads * head_dim
    rows = batch_tile * seq

    x = x_ref[...].astype(f32)          # residual / LN path stays f32
    x_bf = x.astype(bf16)               # bf16 inputs for the MXU

    # ---- fused QKV projection: one matmul, 1/sqrt(d) already folded into Q ----
    qkv = (jnp.dot(x_bf, wqkv_ref[...], preferred_element_type=f32)
           + bqkv_ref[...]).astype(bf16)            # drop f32 copies immediately

    q = qkv[:, :hidden]
    k = qkv[:, hidden:2 * hidden]
    v = qkv[:, 2 * hidden:]

    # ---- head split: (rows, H) -> (batch_tile*num_heads, seq, head_dim) ------
    # head-major along axis 0 (single leading batch dim for the MXU einsums).
    def split_heads(t):
        t3 = t.reshape(batch_tile, seq, hidden)
        return jnp.concatenate(
            [t3[:, :, h * head_dim:(h + 1) * head_dim] for h in range(num_heads)],
            axis=0)

    qh = split_heads(q)
    kh = split_heads(k)
    vh = split_heads(v)

    # ---- batched attention (contraction on the last dim of both operands) ----
    scores = jnp.einsum("nqd,nkd->nqk", qh, kh, preferred_element_type=f32)
    scores = scores - jnp.max(scores, axis=-1, keepdims=True)
    probs = jnp.exp(scores)
    denom = jnp.sum(probs, axis=-1, keepdims=True)
    probs = probs * pl.reciprocal(denom, approx=True)      # EUP slot, frees VALU
    ctx = jnp.einsum("nqk,nkd->nqd", probs.astype(bf16), vh,
                     preferred_element_type=f32)

    # ---- head merge back to (rows, H) -----------------------------------------
    ctx = jnp.concatenate(
        [ctx[h * batch_tile:(h + 1) * batch_tile] for h in range(num_heads)],
        axis=-1).reshape(rows, hidden).astype(bf16)

    # ---- BertSelfOutput: dense + residual + LayerNorm (f32 epilogue) ----------
    attn = jnp.dot(ctx, wo_ref[...], preferred_element_type=f32) + bo_ref[...]
    out = _layer_norm(attn + x, ln_g_ref[...], ln_b_ref[...], eps)
    out_ref[...] = out.astype(out_ref.dtype)


# --------------------------- param packing ----------------------------------
def pack_params(params, num_heads):
    """f32 master params -> kernel-ready fused bf16 weights / 2-D f32 biases."""
    H = params["wq"].shape[0]
    assert H % num_heads == 0
    head_dim = H // num_heads
    scale = 1.0 / math.sqrt(head_dim)
    f32, bf16 = jnp.float32, jnp.bfloat16
    wqkv = jnp.concatenate(
        [params["wq"].astype(f32) * scale,          # fold softmax scale into Q
         params["wk"].astype(f32),
         params["wv"].astype(f32)], axis=1).astype(bf16)
    bqkv = jnp.concatenate(
        [params["bq"] * scale, params["bk"], params["bv"]]).reshape(1, 3 * H).astype(f32)
    return {
        "wqkv": wqkv,
        "bqkv": bqkv,
        "wo": params["wo"].astype(bf16),
        "bo": params["bo"].reshape(1, H).astype(f32),
        "ln_g": params["ln_g"].reshape(1, H).astype(f32),
        "ln_b": params["ln_b"].reshape(1, H).astype(f32),
    }


# --------------------------- wrapper -----------------------------------------
_PACKED_ORDER = ("wqkv", "bqkv", "wo", "bo", "ln_g", "ln_b")


def bert_attention_forward(hidden_states, packed, *, num_heads,
                           batch_tile=None, vmem_limit_bytes=32 * 1024 * 1024):
    """hidden_states: (B, S, H) f32.  Returns attention_output: (B, S, H) f32."""
    B, S, H = hidden_states.shape
    assert H % num_heads == 0
    head_dim = H // num_heads

    if batch_tile is None:
        # >= 2 grid steps by default: megacore sharding on v7x + pipelined DMA.
        batch_tile = B // 2 if (B >= 2 and B % 2 == 0) else 1
    assert B % batch_tile == 0
    num_tiles = B // batch_tile
    rows_per_tile = batch_tile * S

    # Present one flat, lane-dense [B*S, H] slab to the kernel.
    x2d = hidden_states.reshape(B * S, H)
    weights = [packed[name] for name in _PACKED_ORDER]

    kernel = functools.partial(
        bert_attention_kernel,
        batch_tile=batch_tile, seq=S,
        num_heads=num_heads, head_dim=head_dim, eps=LAYER_NORM_EPS,
    )

    def _invariant_spec(arr):
        nd = arr.ndim
        return pl.BlockSpec(arr.shape, lambda i, _nd=nd: (0,) * _nd)

    # Advisory cost estimate for XLA's scheduler.
    itemsize = hidden_states.dtype.itemsize
    flops = (2 * B * S * H * 3 * H                       # fused QKV projection
             + 4 * B * num_heads * S * S * head_dim      # QK^T + PV
             + 2 * B * S * H * H)                        # output projection
    transcendentals = B * num_heads * S * S + B * num_heads * S + B * S
    bytes_accessed = (2 * B * S * H * itemsize
                      + sum(w.size * w.dtype.itemsize for w in weights))

    out2d = pl.pallas_call(
        kernel,
        out_shape=jax.ShapeDtypeStruct((B * S, H), hidden_states.dtype),
        grid=(num_tiles,),
        in_specs=[pl.BlockSpec((rows_per_tile, H), lambda i: (i, 0))]
        + [_invariant_spec(w) for w in weights],
        out_specs=pl.BlockSpec((rows_per_tile, H), lambda i: (i, 0)),
        compiler_params=pltpu.CompilerParams(
            dimension_semantics=("parallel",),     # batch tiles are independent
            vmem_limit_bytes=vmem_limit_bytes,     # v5e default scoped limit is 16 MiB
        ),
        cost_estimate=pl.CostEstimate(
            flops=flops, transcendentals=transcendentals,
            bytes_accessed=bytes_accessed),
    )(x2d, *weights)
    return out2d.reshape(B, S, H)


# --------------------------- deterministic params ----------------------------
def init_params(key):
    """f32 master parameters (torch-equivalent, weights stored as weight.T)."""
    ks = jax.random.split(key, 8)
    scale = 0.02
    f32 = jnp.float32
    return {
        "wq": scale * jax.random.normal(ks[0], (HIDDEN, HIDDEN), f32),
        "wk": scale * jax.random.normal(ks[1], (HIDDEN, HIDDEN), f32),
        "wv": scale * jax.random.normal(ks[2], (HIDDEN, HIDDEN), f32),
        "wo": scale * jax.random.normal(ks[3], (HIDDEN, HIDDEN), f32),
        "bq": scale * jax.random.normal(ks[4], (HIDDEN,), f32),
        "bk": scale * jax.random.normal(ks[5], (HIDDEN,), f32),
        "bv": scale * jax.random.normal(ks[6], (HIDDEN,), f32),
        "bo": scale * jax.random.normal(ks[7], (HIDDEN,), f32),
        "ln_g": jnp.ones((HIDDEN,), f32),
        "ln_b": jnp.zeros((HIDDEN,), f32),
    }


# --------------------------- pure-JAX f32 reference (sanity check) -----------
def _ref_attention(x, p, num_heads=NUM_HEADS):
    B, S, H = x.shape
    d = H // num_heads
    q = x @ p["wq"] + p["bq"]
    k = x @ p["wk"] + p["bk"]
    v = x @ p["wv"] + p["bv"]
    q = q.reshape(B, S, num_heads, d).transpose(0, 2, 1, 3)
    k = k.reshape(B, S, num_heads, d).transpose(0, 2, 1, 3)
    v = v.reshape(B, S, num_heads, d).transpose(0, 2, 1, 3)
    scores = jnp.einsum("bhqd,bhkd->bhqk", q, k) / math.sqrt(d)
    probs = jax.nn.softmax(scores, axis=-1)
    ctx = jnp.einsum("bhqk,bhkd->bhqd", probs, v)
    ctx = ctx.transpose(0, 2, 1, 3).reshape(B, S, H)
    attn = ctx @ p["wo"] + p["bo"]
    return _layer_norm(attn + x, p["ln_g"], p["ln_b"], LAYER_NORM_EPS)


# --------------------------- main --------------------------------------------
if __name__ == "__main__":
    root = jax.random.PRNGKey(0)
    k_x, k_p = jax.random.split(root)

    hidden_states = jax.random.normal(k_x, (BATCH, SEQ, HIDDEN), jnp.float32)
    params = init_params(k_p)
    packed = pack_params(params, NUM_HEADS)

    out = bert_attention_forward(hidden_states, packed, num_heads=NUM_HEADS)
    out = jax.block_until_ready(out)

    ref = _ref_attention(hidden_states, params)
    assert out.shape == (BATCH, SEQ, HIDDEN)
    # bf16 weights/activations on the MXU path + approx reciprocal vs f32 ref.
    assert jnp.allclose(out, ref, atol=1e-2, rtol=1e-2), "mismatch vs reference"

    print("KERNEL_OK")
</pallas_src>

<mosaic_0001>
module attributes {stable_mosaic.version = 11 : i64} {
  func.func @bert_attention_kernel(%arg0: i32, %arg1: memref<8x32xf32, #tpu.memory_space<vmem>>, %arg2: memref<32x96xbf16, #tpu.memory_space<vmem>>, %arg3: memref<1x96xf32, #tpu.memory_space<vmem>>, %arg4: memref<32x32xbf16, #tpu.memory_space<vmem>>, %arg5: memref<1x32xf32, #tpu.memory_space<vmem>>, %arg6: memref<1x32xf32, #tpu.memory_space<vmem>>, %arg7: memref<1x32xf32, #tpu.memory_space<vmem>>, %arg8: memref<8x32xf32, #tpu.memory_space<vmem>>) attributes {dimension_semantics = [#tpu.dimension_semantics<parallel>], iteration_bounds = array<i64: 2>, scalar_prefetch = 0 : i64, scratch_operands = 0 : i64, tpu.core_type = #tpu.core_type<tc>, window_params = [{transform_indices = @transform_0, window_bounds = array<i64: 8, 32>}, {pipeline_mode = #tpu.pipeline_mode<synchronous>, transform_indices = @transform_1, window_bounds = array<i64: 32, 96>}, {pipeline_mode = #tpu.pipeline_mode<synchronous>, transform_indices = @transform_2, window_bounds = array<i64: 1, 96>}, {pipeline_mode = #tpu.pipeline_mode<synchronous>, transform_indices = @transform_3, window_bounds = array<i64: 32, 32>}, {pipeline_mode = #tpu.pipeline_mode<synchronous>, transform_indices = @transform_4, window_bounds = array<i64: 1, 32>}, {pipeline_mode = #tpu.pipeline_mode<synchronous>, transform_indices = @transform_5, window_bounds = array<i64: 1, 32>}, {pipeline_mode = #tpu.pipeline_mode<synchronous>, transform_indices = @transform_6, window_bounds = array<i64: 1, 32>}, {transform_indices = @transform_7, window_bounds = array<i64: 8, 32>}]} {
    %c0 = arith.constant 0 : index
    %c0_0 = arith.constant 0 : index
    %0 = vector.load %arg1[%c0, %c0_0] : memref<8x32xf32, #tpu.memory_space<vmem>>, vector<8x32xf32>
    %1 = arith.truncf %0 : vector<8x32xf32> to vector<8x32xbf16>
    %c0_1 = arith.constant 0 : index
    %c0_2 = arith.constant 0 : index
    %2 = vector.load %arg2[%c0_1, %c0_2] : memref<32x96xbf16, #tpu.memory_space<vmem>>, vector<32x96xbf16>
    %cst = arith.constant dense<0.000000e+00> : vector<8x96xf32>
    %3 = tpu.matmul %1, %2, %cst {dimension_numbers = #tpu.dot_dimension_numbers<[1], [0], [0], [1], [0, 0, 1, 1], [], []>} : vector<8x32xbf16>, vector<32x96xbf16>, vector<8x96xf32> -> vector<8x96xf32>
    %c0_3 = arith.constant 0 : index
    %c0_4 = arith.constant 0 : index
    %4 = vector.load %arg3[%c0_3, %c0_4] : memref<1x96xf32, #tpu.memory_space<vmem>>, vector<1x96xf32>
    %5 = vector.broadcast %4 : vector<1x96xf32> to vector<8x96xf32>
    %6 = arith.addf %3, %5 : vector<8x96xf32>
    %7 = arith.truncf %6 : vector<8x96xf32> to vector<8x96xbf16>
    %8 = vector.extract_strided_slice %7 {offsets = [0, 0], sizes = [8, 32], strides = [1, 1]} : vector<8x96xbf16> to vector<8x32xbf16>
    %9 = vector.extract_strided_slice %7 {offsets = [0, 32], sizes = [8, 32], strides = [1, 1]} : vector<8x96xbf16> to vector<8x32xbf16>
    %10 = vector.extract_strided_slice %7 {offsets = [0, 64], sizes = [8, 32], strides = [1, 1]} : vector<8x96xbf16> to vector<8x32xbf16>
    %11 = vector.shape_cast %8 : vector<8x32xbf16> to vector<1x8x32xbf16>
    %12 = vector.extract_strided_slice %11 {offsets = [0, 0, 0], sizes = [1, 8, 8], strides = [1, 1, 1]} : vector<1x8x32xbf16> to vector<1x8x8xbf16>
    %13 = vector.extract_strided_slice %11 {offsets = [0, 0, 8], sizes = [1, 8, 8], strides = [1, 1, 1]} : vector<1x8x32xbf16> to vector<1x8x8xbf16>
    %14 = vector.extract_strided_slice %11 {offsets = [0, 0, 16], sizes = [1, 8, 8], strides = [1, 1, 1]} : vector<1x8x32xbf16> to vector<1x8x8xbf16>
    %15 = vector.extract_strided_slice %11 {offsets = [0, 0, 24], sizes = [1, 8, 8], strides = [1, 1, 1]} : vector<1x8x32xbf16> to vector<1x8x8xbf16>
    %16 = tpu.concatenate %12, %13, %14, %15 in 0 : vector<1x8x8xbf16>, vector<1x8x8xbf16>, vector<1x8x8xbf16>, vector<1x8x8xbf16> -> vector<4x8x8xbf16>
    %17 = vector.shape_cast %9 : vector<8x32xbf16> to vector<1x8x32xbf16>
    %18 = vector.extract_strided_slice %17 {offsets = [0, 0, 0], sizes = [1, 8, 8], strides = [1, 1, 1]} : vector<1x8x32xbf16> to vector<1x8x8xbf16>
    %19 = vector.extract_strided_slice %17 {offsets = [0, 0, 8], sizes = [1, 8, 8], strides = [1, 1, 1]} : vector<1x8x32xbf16> to vector<1x8x8xbf16>
    %20 = vector.extract_strided_slice %17 {offsets = [0, 0, 16], sizes = [1, 8, 8], strides = [1, 1, 1]} : vector<1x8x32xbf16> to vector<1x8x8xbf16>
    %21 = vector.extract_strided_slice %17 {offsets = [0, 0, 24], sizes = [1, 8, 8], strides = [1, 1, 1]} : vector<1x8x32xbf16> to vector<1x8x8xbf16>
    %22 = tpu.concatenate %18, %19, %20, %21 in 0 : vector<1x8x8xbf16>, vector<1x8x8xbf16>, vector<1x8x8xbf16>, vector<1x8x8xbf16> -> vector<4x8x8xbf16>
    %23 = vector.shape_cast %10 : vector<8x32xbf16> to vector<1x8x32xbf16>
    %24 = vector.extract_strided_slice %23 {offsets = [0, 0, 0], sizes = [1, 8, 8], strides = [1, 1, 1]} : vector<1x8x32xbf16> to vector<1x8x8xbf16>
    %25 = vector.extract_strided_slice %23 {offsets = [0, 0, 8], sizes = [1, 8, 8], strides = [1, 1, 1]} : vector<1x8x32xbf16> to vector<1x8x8xbf16>
    %26 = vector.extract_strided_slice %23 {offsets = [0, 0, 16], sizes = [1, 8, 8], strides = [1, 1, 1]} : vector<1x8x32xbf16> to vector<1x8x8xbf16>
    %27 = vector.extract_strided_slice %23 {offsets = [0, 0, 24], sizes = [1, 8, 8], strides = [1, 1, 1]} : vector<1x8x32xbf16> to vector<1x8x8xbf16>
    %28 = tpu.concatenate %24, %25, %26, %27 in 0 : vector<1x8x8xbf16>, vector<1x8x8xbf16>, vector<1x8x8xbf16>, vector<1x8x8xbf16> -> vector<4x8x8xbf16>
    "tpu.trace_start"() <{level = 10 : i32, message = "nqd,nkd->nqk"}> : () -> ()
    %cst_5 = arith.constant dense<0.000000e+00> : vector<4x8x8xf32>
    %29 = tpu.matmul %16, %22, %cst_5 {dimension_numbers = #tpu.dot_dimension_numbers<[2], [2], [1], [1], [0, 0, 0, 1, 1, 1], [0], [0]>} : vector<4x8x8xbf16>, vector<4x8x8xbf16>, vector<4x8x8xf32> -> vector<4x8x8xf32>
    "tpu.trace_stop"() : () -> ()
    %cst_6 = arith.constant dense<0xFF800000> : vector<4x8xf32>
    %30 = vector.multi_reduction <maximumf>, %29, %cst_6 [2] : vector<4x8x8xf32> to vector<4x8xf32>
    %31 = vector.shape_cast %30 : vector<4x8xf32> to vector<4x8x1xf32>
    %32 = vector.broadcast %31 : vector<4x8x1xf32> to vector<4x8x8xf32>
    %33 = arith.subf %29, %32 : vector<4x8x8xf32>
    %34 = math.exp %33 : vector<4x8x8xf32>
    %cst_7 = arith.constant dense<0.000000e+00> : vector<4x8xf32>
    %35 = vector.multi_reduction <add>, %34, %cst_7 [2] : vector<4x8x8xf32> to vector<4x8xf32>
    %36 = vector.shape_cast %35 : vector<4x8xf32> to vector<4x8x1xf32>
    %37 = tpu.reciprocal %36 {approx = true} : vector<4x8x1xf32> -> vector<4x8x1xf32>
    %38 = vector.broadcast %37 : vector<4x8x1xf32> to vector<4x8x8xf32>
    %39 = arith.mulf %34, %38 : vector<4x8x8xf32>
    %40 = arith.truncf %39 : vector<4x8x8xf32> to vector<4x8x8xbf16>
    "tpu.trace_start"() <{level = 10 : i32, message = "nqk,nkd->nqd"}> : () -> ()
    %cst_8 = arith.constant dense<0.000000e+00> : vector<4x8x8xf32>
    %41 = tpu.matmul %40, %28, %cst_8 {dimension_numbers = #tpu.dot_dimension_numbers<[2], [1], [1], [2], [0, 0, 0, 1, 1, 2], [0], [0]>} : vector<4x8x8xbf16>, vector<4x8x8xbf16>, vector<4x8x8xf32> -> vector<4x8x8xf32>
    "tpu.trace_stop"() : () -> ()
    %42 = vector.extract_strided_slice %41 {offsets = [0, 0, 0], sizes = [1, 8, 8], strides = [1, 1, 1]} : vector<4x8x8xf32> to vector<1x8x8xf32>
    %43 = vector.extract_strided_slice %41 {offsets = [1, 0, 0], sizes = [1, 8, 8], strides = [1, 1, 1]} : vector<4x8x8xf32> to vector<1x8x8xf32>
    %44 = vector.extract_strided_slice %41 {offsets = [2, 0, 0], sizes = [1, 8, 8], strides = [1, 1, 1]} : vector<4x8x8xf32> to vector<1x8x8xf32>
    %45 = vector.extract_strided_slice %41 {offsets = [3, 0, 0], sizes = [1, 8, 8], strides = [1, 1, 1]} : vector<4x8x8xf32> to vector<1x8x8xf32>
    %46 = tpu.concatenate %42, %43, %44, %45 in 2 : vector<1x8x8xf32>, vector<1x8x8xf32>, vector<1x8x8xf32>, vector<1x8x8xf32> -> vector<1x8x32xf32>
    %47 = vector.shape_cast %46 : vector<1x8x32xf32> to vector<8x32xf32>
    %48 = arith.truncf %47 : vector<8x32xf32> to vector<8x32xbf16>
    %c0_9 = arith.constant 0 : index
    %c0_10 = arith.constant 0 : index
    %49 = vector.load %arg4[%c0_9, %c0_10] : memref<32x32xbf16, #tpu.memory_space<vmem>>, vector<32x32xbf16>
    %cst_11 = arith.constant dense<0.000000e+00> : vector<8x32xf32>
    %50 = tpu.matmul %48, %49, %cst_11 {dimension_numbers = #tpu.dot_dimension_numbers<[1], [0], [0], [1], [0, 0, 1, 1], [], []>} : vector<8x32xbf16>, vector<32x32xbf16>, vector<8x32xf32> -> vector<8x32xf32>
    %c0_12 = arith.constant 0 : index
    %c0_13 = arith.constant 0 : index
    %51 = vector.load %arg5[%c0_12, %c0_13] : memref<1x32xf32, #tpu.memory_space<vmem>>, vector<1x32xf32>
    %52 = vector.broadcast %51 : vector<1x32xf32> to vector<8x32xf32>
    %53 = arith.addf %50, %52 : vector<8x32xf32>
    %54 = arith.addf %53, %0 : vector<8x32xf32>
    %c0_14 = arith.constant 0 : index
    %c0_15 = arith.constant 0 : index
    %55 = vector.load %arg6[%c0_14, %c0_15] : memref<1x32xf32, #tpu.memory_space<vmem>>, vector<1x32xf32>
    %c0_16 = arith.constant 0 : index
    %c0_17 = arith.constant 0 : index
    %56 = vector.load %arg7[%c0_16, %c0_17] : memref<1x32xf32, #tpu.memory_space<vmem>>, vector<1x32xf32>
    %cst_18 = arith.constant dense<0.000000e+00> : vector<8xf32>
    %57 = vector.multi_reduction <add>, %54, %cst_18 [1] : vector<8x32xf32> to vector<8xf32>
    %58 = vector.shape_cast %57 : vector<8xf32> to vector<8x1xf32>
    %cst_19 = arith.constant 3.200000e+01 : f32
    %59 = vector.broadcast %cst_19 : f32 to vector<8x1xf32>
    %60 = arith.divf %58, %59 : vector<8x1xf32>
    %61 = vector.broadcast %60 : vector<8x1xf32> to vector<8x32xf32>
    %62 = arith.subf %54, %61 : vector<8x32xf32>
    %63 = arith.mulf %62, %62 : vector<8x32xf32>
    %cst_20 = arith.constant dense<0.000000e+00> : vector<8xf32>
    %64 = vector.multi_reduction <add>, %63, %cst_20 [1] : vector<8x32xf32> to vector<8xf32>
    %65 = vector.shape_cast %64 : vector<8xf32> to vector<8x1xf32>
    %cst_21 = arith.constant 3.200000e+01 : f32
    %66 = vector.broadcast %cst_21 : f32 to vector<8x1xf32>
    %67 = arith.divf %65, %66 : vector<8x1xf32>
    %68 = vector.broadcast %60 : vector<8x1xf32> to vector<8x32xf32>
    %69 = arith.subf %54, %68 : vector<8x32xf32>
    %cst_22 = arith.constant 9.99999996E-13 : f32
    %70 = vector.broadcast %cst_22 : f32 to vector<8x1xf32>
    %71 = arith.addf %67, %70 : vector<8x1xf32>
    %72 = math.rsqrt %71 : vector<8x1xf32>
    %73 = vector.broadcast %72 : vector<8x1xf32> to vector<8x32xf32>
    %74 = arith.mulf %69, %73 : vector<8x32xf32>
    %75 = vector.broadcast %55 : vector<1x32xf32> to vector<8x32xf32>
    %76 = arith.mulf %74, %75 : vector<8x32xf32>
    %77 = vector.broadcast %56 : vector<1x32xf32> to vector<8x32xf32>
    %78 = arith.addf %76, %77 : vector<8x32xf32>
    %c0_23 = arith.constant 0 : index
    %c0_24 = arith.constant 0 : index
    %79 = vector.load %arg8[%c0_23, %c0_24] : memref<8x32xf32, #tpu.memory_space<vmem>>, vector<8x32xf32>
    tpu.vector_store %arg8[%c0_23, %c0_24], %78 {strides = array<i32>} : memref<8x32xf32, #tpu.memory_space<vmem>>, vector<8x32xf32>,
    return
  }
  func.func @transform_0(%arg0: i32) -> (i32, i32) {
    %c0_i32 = arith.constant 0 : i32
    %c0_i32_0 = arith.constant 0 : i32
    return %arg0, %c0_i32 : i32, i32
  }
  func.func @transform_1(%arg0: i32) -> (i32, i32) {
    %c0_i32 = arith.constant 0 : i32
    %c0_i32_0 = arith.constant 0 : i32
    %c0_i32_1 = arith.constant 0 : i32
    return %c0_i32, %c0_i32_0 : i32, i32
  }
  func.func @transform_2(%arg0: i32) -> (i32, i32) {
    %c0_i32 = arith.constant 0 : i32
    %c0_i32_0 = arith.constant 0 : i32
    %c0_i32_1 = arith.constant 0 : i32
    return %c0_i32, %c0_i32_0 : i32, i32
  }
  func.func @transform_3(%arg0: i32) -> (i32, i32) {
    %c0_i32 = arith.constant 0 : i32
    %c0_i32_0 = arith.constant 0 : i32
    %c0_i32_1 = arith.constant 0 : i32
    return %c0_i32, %c0_i32_0 : i32, i32
  }
  func.func @transform_4(%arg0: i32) -> (i32, i32) {
    %c0_i32 = arith.constant 0 : i32
    %c0_i32_0 = arith.constant 0 : i32
    %c0_i32_1 = arith.constant 0 : i32
    return %c0_i32, %c0_i32_0 : i32, i32
  }
  func.func @transform_5(%arg0: i32) -> (i32, i32) {
    %c0_i32 = arith.constant 0 : i32
    %c0_i32_0 = arith.constant 0 : i32
    %c0_i32_1 = arith.constant 0 : i32
    return %c0_i32, %c0_i32_0 : i32, i32
  }
  func.func @transform_6(%arg0: i32) -> (i32, i32) {
    %c0_i32 = arith.constant 0 : i32
    %c0_i32_0 = arith.constant 0 : i32
    %c0_i32_1 = arith.constant 0 : i32
    return %c0_i32, %c0_i32_0 : i32, i32
  }
  func.func @transform_7(%arg0: i32) -> (i32, i32) {
    %c0_i32 = arith.constant 0 : i32
    %c0_i32_0 = arith.constant 0 : i32
    return %arg0, %c0_i32 : i32, i32
  }
}

</mosaic_0001>

<llo_original>
// kernel: tpu_custom_call.1
$region0: #{tpu_custom_call.1}
  #allocation0 [shape = 'u32[]', space=smem, size = 0x4, offset = 0x4, fixed_abs, tag = 'smem constant byte address 0x4 - core index']
  #allocation1 [shape = 'u32[144,128]{1,0:T(1,128)}', space=vmem, size = 0x12000, scoped, tag = 'internal scratch']
  %s0 = inlined_call_operand.hbm [shape: f32[16,32], index: 0, kind: input, shape index: {}]
  %s1 = inlined_call_operand.hbm [shape: bf16[32,96], index: 1, kind: input, shape index: {}]
  %s2 = inlined_call_operand.vmem [shape: f32[1,96], index: 2, kind: input, shape index: {}]
  %s3 = inlined_call_operand.hbm [shape: bf16[32,32], index: 3, kind: input, shape index: {}]
  %s4 = inlined_call_operand.vmem [shape: f32[1,32], index: 4, kind: input, shape index: {}]
  %s5 = inlined_call_operand.vmem [shape: f32[1,32], index: 5, kind: input, shape index: {}]
  %s6 = inlined_call_operand.vmem [shape: f32[1,32], index: 6, kind: input, shape index: {}]
  %s7 = inlined_call_operand.hbm [shape: f32[16,32], index: 7, kind: output, shape index: {}]
  %s8 = sld [smem:[#allocation0]]
  $region73: #{tpu_custom_call.1} parent=0
    _
  %s10 = ssub.s32 1, %s8
  %s11 = scalar_select 0, %s10, %s8
  $region1: #{tpu_custom_call.1} parent=0
    #allocation2 [shape = 'u8[8192]{0}', space=vmem, size = 0x2000, scoped, tag = 'input window, operand 0']
    #allocation3 [shape = 's32[2]{0}', space=sflag, size = 0x8, scoped, tag = 'scoped memory for tpu_custom_call.1']
    #allocation4 [shape = 's32[2]{0}', space=sflag, size = 0x8, scoped, tag = 'scoped memory for tpu_custom_call.1']
    #allocation5 [shape = 'u8[8192]{0}', space=vmem, size = 0x2000, scoped, tag = 'input window, operand 1, single buffered']
    #allocation6 [shape = 's32[1]{0}', space=sflag, size = 0x4, scoped, tag = 'scoped memory for tpu_custom_call.1']
    #allocation7 [shape = 'u8[8192]{0}', space=vmem, size = 0x2000, scoped, tag = 'input window, operand 3, single buffered']
    #allocation8 [shape = 'u8[8192]{0}', space=vmem, size = 0x2000, scoped, tag = 'output window, operand 0']
    %12 = vsyncpa [#allocation3], 0
    %s13 = scalar_lea.sflag [#allocation3], 1
    %14 = vsyncpa %s13, 0
    %15 = vsyncpa [#allocation6], 0
    %16 = vsyncpa [#allocation4], 0
    %s17 = scalar_lea.sflag [#allocation4], 1
    %18 = vsyncpa %s17, 0
    loop: start=0, step=1, limit=4
    $region2: #{tpu_custom_call.1} parent=1 // loop_pre_header
      _
    $region3: #{tpu_custom_call.1} parent=1 // loop_header
      %s20 = sphi 0, %s24
      %p21 = scmp.ge.s32.totalorder %s20, 4
      %s30 = sphi 0, %s32
      %s33 = sphi 0, %s30
      %s34 = sphi 0, %s33
      %s50 = sphi 0, %s34
      %s54 = sphi 0, %s54
      %s56 = sphi 0, %s54
      %s57 = sphi 0, %s56
      %s71 = sphi 0, %s57
      %s75 = sphi 0, %s75
      %s77 = sphi 0, %s75
      %s78 = sphi 0, %s77
      %s92 = sphi 0, %s78
      %s96 = sphi 0, %s96
      %s98 = sphi 0, %s96
      %s99 = sphi 0, %s98
      %s113 = sphi 0, %s99
      %s117 = sphi 0, %s117
      %s119 = sphi 0, %s117
      %s120 = sphi 0, %s119
      %s134 = sphi 0, %s120
      %s138 = sphi 0, %s138
      %s140 = sphi 0, %s138
      %s141 = sphi 0, %s140
      %s155 = sphi 0, %s141
      %s159 = sphi 0, %s159
      %s161 = sphi 0, %s159
      %s162 = sphi 0, %s161
      %s176 = sphi 0, %s162
      %s182 = sphi 0, %s184
      %s185 = sphi 0, %s182
      %s186 = sphi 0, %s185
      %s202 = sphi 0, %s186
    $region4: #{tpu_custom_call.1} parent=1 // loop_header_branch
      %23 = sbr.rel (%p21) target = $region8
    $region5: #{tpu_custom_call.1} parent=1 // loop_body
      %s25 = ssub.s32 %s20, 1
      %s26 = ssub.s32 %s20, 2
      %s27 = sadd.s32 %s20, 1
      %s28 = ssub.s32 %s20, %s27
      %p29 = scmp.eq.s32.totalorder %s28, 0
      %s31 = sadd.s32 %s30, 1
      %s32 = scalar_select %p29, %s30, %s31
      %p35 = pneg %p29
      %p36 = scmp.eq.s32.totalorder %s20, 1
      %p37 = por %p35, %p36
      %p38 = scmp.ne.s32.totalorder %s30, %s33
      %p39 = scmp.eq.s32.totalorder %s20, 0
      %p40 = por %p38, %p39
      %p41 = scmp.ne.s32.totalorder %s30, %s33
      %p42 = scmp.eq.s32.totalorder %s25, 1
      %p43 = por %p41, %p42
      %p44 = scmp.ne.s32.totalorder %s33, %s34
      %p45 = scmp.eq.s32.totalorder %s25, 0
      %p46 = por %p44, %p45
      %p47 = scmp.ne.s32.totalorder %s33, %s34
      %p48 = scmp.eq.s32.totalorder %s26, 1
      %p49 = por %p47, %p48
      %p51 = scmp.ne.s32.totalorder %s34, %s50
      %p52 = scmp.eq.s32.totalorder %s26, 0
      %p53 = por %p51, %p52
      %s55 = sadd.s32 %s54, 1
      %p58 = scmp.eq.s32.totalorder %s20, 1
      %p59 = scmp.ne.s32.totalorder %s54, %s56
      %p60 = scmp.eq.s32.totalorder %s20, 0
      %p61 = por %p59, %p60
      %p62 = scmp.ne.s32.totalorder %s54, %s56
      %p63 = scmp.eq.s32.totalorder %s25, 1
      %p64 = por %p62, %p63
      %p65 = scmp.ne.s32.totalorder %s56, %s57
      %p66 = scmp.eq.s32.totalorder %s25, 0
      %p67 = por %p65, %p66
      %p68 = scmp.ne.s32.totalorder %s56, %s57
      %p69 = scmp.eq.s32.totalorder %s26, 1
      %p70 = por %p68, %p69
      %p72 = scmp.ne.s32.totalorder %s57, %s71
      %p73 = scmp.eq.s32.totalorder %s26, 0
      %p74 = por %p72, %p73
      %s76 = sadd.s32 %s75, 1
      %p79 = scmp.eq.s32.totalorder %s20, 1
      %p80 = scmp.ne.s32.totalorder %s75, %s77
      %p81 = scmp.eq.s32.totalorder %s20, 0
      %p82 = por %p80, %p81
      %p83 = scmp.ne.s32.totalorder %s75, %s77
      %p84 = scmp.eq.s32.totalorder %s25, 1
      %p85 = por %p83, %p84
      %p86 = scmp.ne.s32.totalorder %s77, %s78
      %p87 = scmp.eq.s32.totalorder %s25, 0
      %p88 = por %p86, %p87
      %p89 = scmp.ne.s32.totalorder %s77, %s78
      %p90 = scmp.eq.s32.totalorder %s26, 1
      %p91 = por %p89, %p90
      %p93 = scmp.ne.s32.totalorder %s78, %s92
      %p94 = scmp.eq.s32.totalorder %s26, 0
      %p95 = por %p93, %p94
      %s97 = sadd.s32 %s96, 1
      %p100 = scmp.eq.s32.totalorder %s20, 1
      %p101 = scmp.ne.s32.totalorder %s96, %s98
      %p102 = scmp.eq.s32.totalorder %s20, 0
      %p103 = por %p101, %p102
      %p104 = scmp.ne.s32.totalorder %s96, %s98
      %p105 = scmp.eq.s32.totalorder %s25, 1
      %p106 = por %p104, %p105
      %p107 = scmp.ne.s32.totalorder %s98, %s99
      %p108 = scmp.eq.s32.totalorder %s25, 0
      %p109 = por %p107, %p108
      %p110 = scmp.ne.s32.totalorder %s98, %s99
      %p111 = scmp.eq.s32.totalorder %s26, 1
      %p112 = por %p110, %p111
      %p114 = scmp.ne.s32.totalorder %s99, %s113
      %p115 = scmp.eq.s32.totalorder %s26, 0
      %p116 = por %p114, %p115
      %s118 = sadd.s32 %s117, 1
      %p121 = scmp.eq.s32.totalorder %s20, 1
      %p122 = scmp.ne.s32.totalorder %s117, %s119
      %p123 = scmp.eq.s32.totalorder %s20, 0
      %p124 = por %p122, %p123
      %p125 = scmp.ne.s32.totalorder %s117, %s119
      %p126 = scmp.eq.s32.totalorder %s25, 1
      %p127 = por %p125, %p126
      %p128 = scmp.ne.s32.totalorder %s119, %s120
      %p129 = scmp.eq.s32.totalorder %s25, 0
      %p130 = por %p128, %p129
      %p131 = scmp.ne.s32.totalorder %s119, %s120
      %p132 = scmp.eq.s32.totalorder %s26, 1
      %p133 = por %p131, %p132
      %p135 = scmp.ne.s32.totalorder %s120, %s134
      %p136 = scmp.eq.s32.totalorder %s26, 0
      %p137 = por %p135, %p136
      %s139 = sadd.s32 %s138, 1
      %p142 = scmp.eq.s32.totalorder %s20, 1
      %p143 = scmp.ne.s32.totalorder %s138, %s140
      %p144 = scmp.eq.s32.totalorder %s20, 0
      %p145 = por %p143, %p144
      %p146 = scmp.ne.s32.totalorder %s138, %s140
      %p147 = scmp.eq.s32.totalorder %s25, 1
      %p148 = por %p146, %p147
      %p149 = scmp.ne.s32.totalorder %s140, %s141
      %p150 = scmp.eq.s32.totalorder %s25, 0
      %p151 = por %p149, %p150
      %p152 = scmp.ne.s32.totalorder %s140, %s141
      %p153 = scmp.eq.s32.totalorder %s26, 1
      %p154 = por %p152, %p153
      %p156 = scmp.ne.s32.totalorder %s141, %s155
      %p157 = scmp.eq.s32.totalorder %s26, 0
      %p158 = por %p156, %p157
      %s160 = sadd.s32 %s159, 1
      %p163 = scmp.eq.s32.totalorder %s20, 1
      %p164 = scmp.ne.s32.totalorder %s159, %s161
      %p165 = scmp.eq.s32.totalorder %s20, 0
      %p166 = por %p164, %p165
      %p167 = scmp.ne.s32.totalorder %s159, %s161
      %p168 = scmp.eq.s32.totalorder %s25, 1
      %p169 = por %p167, %p168
      %p170 = scmp.ne.s32.totalorder %s161, %s162
      %p171 = scmp.eq.s32.totalorder %s25, 0
      %p172 = por %p170, %p171
      %p173 = scmp.ne.s32.totalorder %s161, %s162
      %p174 = scmp.eq.s32.totalorder %s26, 1
      %p175 = por %p173, %p174
      %p177 = scmp.ne.s32.totalorder %s162, %s176
      %p178 = scmp.eq.s32.totalorder %s26, 0
      %p179 = por %p177, %p178
      %s180 = ssub.s32 %s20, %s27
      %p181 = scmp.eq.s32.totalorder %s180, 0
      %s183 = sadd.s32 %s182, 1
      %s184 = scalar_select %p181, %s182, %s183
      %p187 = pneg %p181
      %p188 = scmp.eq.s32.totalorder %s20, 1
      %p189 = por %p187, %p188
      %p190 = scmp.ne.s32.totalorder %s182, %s185
      %p191 = scmp.eq.s32.totalorder %s20, 0
      %p192 = por %p190, %p191
      %p193 = scmp.ne.s32.totalorder %s182, %s185
      %p194 = scmp.eq.s32.totalorder %s25, 1
      %p195 = por %p193, %p194
      %p196 = scmp.ne.s32.totalorder %s185, %s186
      %p197 = scmp.eq.s32.totalorder %s25, 0
      %p198 = por %p196, %p197
      %p199 = scmp.ne.s32.totalorder %s185, %s186
      %p200 = scmp.eq.s32.totalorder %s26, 1
      %p201 = por %p199, %p200
      %p203 = scmp.ne.s32.totalorder %s186, %s202
      %p204 = scmp.eq.s32.totalorder %s26, 0
      %p205 = por %p203, %p204
      %p206 = scmp.le.s32.totalorder 1, %s20
      %p207 = scmp.lt.s32.totalorder %s20, 3
      %p208 = pnand %p206, %p207
      %p209 = pneg %p208
      // Predicated region
      $region9: #{tpu_custom_call.1} parent=5 // pred_check
        _
      $region10: #{tpu_custom_call.1} parent=5 // pred_check_branch
        %211 = sbr.rel (%p208) target = $region12
      $region11: #{tpu_custom_call.1} parent=5 // pred_region
        %s212 = ssub.s32 %s20, 1
        // Predicated region
        $region13: #{tpu_custom_call.1} parent=11 // pred_check
          %p213 = pneg %p67
        $region14: #{tpu_custom_call.1} parent=11 // pred_check_branch
          %215 = sbr.rel (%p213) target = $region16
        $region15: #{tpu_custom_call.1} parent=11 // pred_region
          %s217 = ssub.s32 256, 256
          %218 = vsyncadd [#allocation6], %s217
          %s219 = sshll.u32 [#allocation5], 4
          %s220 = int_to_ptr.vmem [resolvable:$true] %s219
          %225 = dma.hbm_to_vmem [thread:$0]  %s1, 256, %s220, [#allocation6], 64, 64, 4
        $region16: #{tpu_custom_call.1} parent=11 // pred_fallthru
          _
        // Predicated region
        $region17: #{tpu_custom_call.1} parent=11 // pred_check
          %p226 = pneg %p88
        $region18: #{tpu_custom_call.1} parent=11 // pred_check_branch
          %228 = sbr.rel (%p226) target = $region20
        $region19: #{tpu_custom_call.1} parent=11 // pred_region
          _
        $region20: #{tpu_custom_call.1} parent=11 // pred_fallthru
          _
        // Predicated region
        $region21: #{tpu_custom_call.1} parent=11 // pred_check
          %p229 = pneg %p109
        $region22: #{tpu_custom_call.1} parent=11 // pred_check_branch
          %231 = sbr.rel (%p229) target = $region24
        $region23: #{tpu_custom_call.1} parent=11 // pred_region
          %s233 = ssub.s32 256, 256
          %234 = vsyncadd [#allocation6], %s233
          %s235 = sshll.u32 [#allocation7], 4
          %s236 = int_to_ptr.vmem [resolvable:$true] %s235
          %241 = dma.hbm_to_vmem [thread:$0]  %s3, 256, %s236, [#allocation6], 64, 64, 4
        $region24: #{tpu_custom_call.1} parent=11 // pred_fallthru
          _
        // Predicated region
        $region25: #{tpu_custom_call.1} parent=11 // pred_check
          %p242 = pneg %p130
        $region26: #{tpu_custom_call.1} parent=11 // pred_check_branch
          %244 = sbr.rel (%p242) target = $region28
        $region27: #{tpu_custom_call.1} parent=11 // pred_region
          _
        $region28: #{tpu_custom_call.1} parent=11 // pred_fallthru
          _
        // Predicated region
        $region29: #{tpu_custom_call.1} parent=11 // pred_check
          %p245 = pneg %p151
        $region30: #{tpu_custom_call.1} parent=11 // pred_check_branch
          %247 = sbr.rel (%p245) target = $region32
        $region31: #{tpu_custom_call.1} parent=11 // pred_region
          _
        $region32: #{tpu_custom_call.1} parent=11 // pred_fallthru
          _
        // Predicated region
        $region33: #{tpu_custom_call.1} parent=11 // pred_check
          %p248 = pneg %p172
        $region34: #{tpu_custom_call.1} parent=11 // pred_check_branch
          %250 = sbr.rel (%p248) target = $region36
        $region35: #{tpu_custom_call.1} parent=11 // pred_region
          _
        $region36: #{tpu_custom_call.1} parent=11 // pred_fallthru
          _
      $region12: #{tpu_custom_call.1} parent=5 // pred_fallthru
        _
      %p251 = scmp.lt.s32.totalorder %s20, 2
      // Predicated region
      $region37: #{tpu_custom_call.1} parent=5 // pred_check
        %p252 = pneg %p251
      $region38: #{tpu_custom_call.1} parent=5 // pred_check_branch
        %254 = sbr.rel (%p252) target = $region40
      $region39: #{tpu_custom_call.1} parent=5 // pred_region
        // Predicated region
        $region41: #{tpu_custom_call.1} parent=39 // pred_check
          %p255 = pneg %p40
        $region42: #{tpu_custom_call.1} parent=39 // pred_check_branch
          %257 = sbr.rel (%p255) target = $region44
        $region43: #{tpu_custom_call.1} parent=39 // pred_region
          %s258 = sand.u32 %s30, 1
          %s259 = scalar_lea.sflag [#allocation3], %s258
          %s260 = sand.u32 %s30, 1
          %s261 = smul.addr %s260, 8
          %s262 = scalar_lea.vmem [#allocation2], %s261
          %s264 = ssub.s32 128, 128
          %265 = vsyncadd %s259, %s264
          %s266 = smul.addr %s20, 128
          %s267 = scalar_lea.hbm %s0, %s266
          %s269 = sshll.u32 %s262, 4
          %s270 = int_to_ptr.vmem [resolvable:$true] %s269
          %272 = dma.hbm_to_vmem [thread:$0]  %s267, 128, %s270, %s259
        $region44: #{tpu_custom_call.1} parent=39 // pred_fallthru
          _
      $region40: #{tpu_custom_call.1} parent=5 // pred_fallthru
        _
      %p273 = scmp.le.s32.totalorder 1, %s20
      %p274 = scmp.lt.s32.totalorder %s20, 3
      %p275 = pnand %p273, %p274
      %p276 = pneg %p275
      // Predicated region
      $region45: #{tpu_custom_call.1} parent=5 // pred_check
        _
      $region46: #{tpu_custom_call.1} parent=5 // pred_check_branch
        %278 = sbr.rel (%p275) target = $region48
      $region47: #{tpu_custom_call.1} parent=5 // pred_region
        %s279 = ssub.s32 %s20, 1
        %s280 = sand.u32 %s33, 1
        %s281 = scalar_lea.sflag [#allocation3], %s280
        %s282 = sand.u32 %s33, 1
        %s283 = smul.addr %s282, 8
        %s284 = scalar_lea.vmem [#allocation2], %s283
        // Predicated region
        $region49: #{tpu_custom_call.1} parent=47 // pred_check
          %p285 = pneg %p46
        $region50: #{tpu_custom_call.1} parent=47 // pred_check_branch
          %287 = sbr.rel (%p285) target = $region52
        $region51: #{tpu_custom_call.1} parent=47 // pred_region
          %288 = dma.done %s281, 128
        $region52: #{tpu_custom_call.1} parent=47 // pred_fallthru
          _
        // Predicated region
        $region53: #{tpu_custom_call.1} parent=47 // pred_check
          %p289 = pneg %p67
        $region54: #{tpu_custom_call.1} parent=47 // pred_check_branch
          %291 = sbr.rel (%p289) target = $region56
        $region55: #{tpu_custom_call.1} parent=47 // pred_region
          %292 = dma.done [#allocation6], 256
        $region56: #{tpu_custom_call.1} parent=47 // pred_fallthru
          _
        // Predicated region
        $region57: #{tpu_custom_call.1} parent=47 // pred_check
          %p293 = pneg %p109
        $region58: #{tpu_custom_call.1} parent=47 // pred_check_branch
          %295 = sbr.rel (%p293) target = $region60
        $region59: #{tpu_custom_call.1} parent=47 // pred_region
          %296 = dma.done [#allocation6], 256
        $region60: #{tpu_custom_call.1} parent=47 // pred_fallthru
          _
        %s297 = sand.u32 %s33, 1
        %s298 = scalar_lea.sflag [#allocation3], %s297
        %s299 = sand.u32 %s33, 1
        %s300 = smul.addr %s299, 8
        %s301 = scalar_lea.vmem [#allocation2], %s300
        %p302 = pneg %p46
        %p303 = pneg %p43
        %p304 = pneg %p67
        %p305 = pneg %p64
        %p306 = pneg %p88
        %p307 = pneg %p85
        %p308 = pneg %p109
        %p309 = pneg %p106
        %p310 = pneg %p130
        %p311 = pneg %p127
        %p312 = pneg %p151
        %p313 = pneg %p148
        %p314 = pneg %p172
        %p315 = pneg %p169
        %p316 = pneg %p198
        %p317 = pneg %p195
        %s318 = sand.u32 %s185, 1
        %s319 = scalar_lea.sflag [#allocation4], %s318
        %s320 = sand.u32 %s185, 1
        %s321 = smul.addr %s320, 8
        %s322 = scalar_lea.vmem [#allocation8], %s321
        %v324 = vld [vmem:[%s284] sm:$0xff]
        %v325 = vpack.c.bf16 %v324, %v324
        %v326 = vld [vmem:[#allocation5] sm:$0xf]
        %v327 = vld [vmem:[#allocation5 + $0x4] sm:$0xf]
        %v328 = vld [vmem:[#allocation5 + $0x8] sm:$0xf]
        %v329 = vld [vmem:[#allocation5 + $0xc] sm:$0xf]
        %v330 = vld [vmem:[%s2] sm:$0x1]
        %v332 = vlaneseq
        %v333 = vshrl.u32 %v332, 7
        %v334 = vsub.s32 0, %v333
        %v335 = vrot.slane %v330, %v334
        %v341 = vunpack.c.l.b16 %v326
        %v342 = vunpack.c.l.b16 %v327
        %v343 = vunpack.c.l.b16 %v328
        %v344 = vunpack.c.l.b16 %v329
        %v345 = vpack.c.b16 %v342, %v341
        %v346 = vpack.c.b16 %v344, %v343
        %vm349 = vcmask 261120
        %v351 = vsel %vm349, %v325, 0
        %353 = vmatprep.subr.bf16.mxu0 0
        %354 = vmatpush1.bf16.msra.mxu0 %v345
        %355 = vmatprep.subr.bf16.mxu0 0
        %356 = vmatpush1.bf16.msra.mxu0 %v346
        %357 = vmatprep.subr.bf16.mxu0 0
        %358 = vmatpush1.bf16.msra.mxu0 0
        %359 = vmatprep.subr.bf16.mxu0 0
        %360 = vmatpush1.bf16.msra.mxu0 0
        %361 = vmatprep.subr.bf16.mxu0 0
        %362 = vmatpush1.bf16.msra.mxu0 0
        %363 = vmatprep.subr.bf16.mxu0 0
        %364 = vmatpush1.bf16.msra.mxu0 0
        %365 = vmatprep.subr.bf16.mxu0 0
        %366 = vmatpush1.bf16.msra.mxu0 0
        %367 = vmatprep.subr.bf16.mxu0 0
        %368 = vmatpush1.bf16.msra.mxu0 0
        %369 = vmatprep.subr.bf16.mxu0 0
        %370 = vmatpush1.bf16.msra.mxu0 0
        %371 = vmatprep.subr.bf16.mxu0 0
        %372 = vmatpush1.bf16.msra.mxu0 0
        %373 = vmatprep.subr.bf16.mxu0 0
        %374 = vmatpush1.bf16.msra.mxu0 0
        %375 = vmatprep.subr.bf16.mxu0 0
        %376 = vmatpush1.bf16.msra.mxu0 0
        %377 = vmatprep.subr.bf16.mxu0 0
        %378 = vmatpush1.bf16.msra.mxu0 0
        %379 = vmatprep.subr.bf16.mxu0 0
        %380 = vmatpush1.bf16.msra.mxu0 0
        %381 = vmatprep.subr.bf16.mxu0 0
        %382 = vmatpush1.bf16.msra.mxu0 0
        %383 = vmatprep.subr.bf16.mxu0 0
        %384 = vmatpush1.bf16.msra.mxu0 0
        %385 = vmatprep.mubr.bf16.mxu0 0
        %386 = vmatmul.mubr.bf16.gmra.mrb[0].mxu0 %v351
        %v387 = vpop.f32.mrb[0].mxu0
        %v388 = vadd.f32 %v335, %v387
        %v389 = vpop.f32.mrb[0].mxu0
        %v390 = vpop.f32.mrb[0].mxu0
        %v391 = vpop.f32.mrb[0].mxu0
        %392 = vdwg.mxu0
        %v393 = vpack.c.bf16 %v388, %v388
        %395 = vrot.lane.b32.xlu0 %v393, 120
        %v396 = vpop.permute.xlu0 %395
        %397 = vrot.lane.b32.xlu0 %v393, 112
        %v398 = vpop.permute.xlu0 %397
        %399 = vrot.lane.b32.xlu0 %v393, 104
        %v400 = vpop.permute.xlu0 %399
        %401 = vrot.lane.b32.xlu0 %v393, 96
        %v402 = vpop.permute.xlu0 %401
        %vm403 = vcmask 64512
        %v405 = vsel %vm403, %v393, 0
        %v408 = vsel %vm403, %v402, 0
        %410 = vmatprep.subr.bf16.mxu0 0
        %411 = vmatpush1.bf16.xpose.msra.mxu0 %v408
        %412 = vmatprep.subr.bf16.mxu0 0
        %413 = vmatpush1.bf16.xpose.msra.mxu0 0
        %414 = vmatprep.subr.bf16.mxu0 0
        %415 = vmatpush1.bf16.xpose.msra.mxu0 0
        %416 = vmatprep.subr.bf16.mxu0 0
        %417 = vmatpush1.bf16.xpose.msra.mxu0 0
        %418 = vmatprep.subr.bf16.mxu0 0
        %419 = vmatpush1.bf16.xpose.msra.mxu0 0
        %420 = vmatprep.subr.bf16.mxu0 0
        %421 = vmatpush1.bf16.xpose.msra.mxu0 0
        %422 = vmatprep.subr.bf16.mxu0 0
        %423 = vmatpush1.bf16.xpose.msra.mxu0 0
        %424 = vmatprep.subr.bf16.mxu0 0
        %425 = vmatpush1.bf16.xpose.msra.mxu0 0
        %426 = vmatprep.subr.bf16.mxu0 0
        %427 = vmatpush1.bf16.xpose.msra.mxu0 0
        %428 = vmatprep.subr.bf16.mxu0 0
        %429 = vmatpush1.bf16.xpose.msra.mxu0 0
        %430 = vmatprep.subr.bf16.mxu0 0
        %431 = vmatpush1.bf16.xpose.msra.mxu0 0
        %432 = vmatprep.subr.bf16.mxu0 0
        %433 = vmatpush1.bf16.xpose.msra.mxu0 0
        %434 = vmatprep.subr.bf16.mxu0 0
        %435 = vmatpush1.bf16.xpose.msra.mxu0 0
        %436 = vmatprep.subr.bf16.mxu0 0
        %437 = vmatpush1.bf16.xpose.msra.mxu0 0
        %438 = vmatprep.subr.bf16.mxu0 0
        %439 = vmatpush1.bf16.xpose.msra.mxu0 0
        %440 = vmatprep.subr.bf16.mxu0 0
        %441 = vmatpush1.bf16.xpose.msra.mxu0 0
        %442 = vmatprep.mubr.bf16.mxu0 0
        %443 = vmatmul.mubr.bf16.gmra.mrb[0].mxu0 %v405
        %v444 = vpop.f32.mrb[0].mxu0
        %v445 = vadd.f32 0.0, %v444
        %v446 = vpop.f32.mrb[0].mxu0
        %v447 = vpop.f32.mrb[0].mxu0
        %v448 = vpop.f32.mrb[0].mxu0
        %449 = vdwg.mxu0
        %450 = vrot.lane.b32.xlu0 %v396, 96
        %v451 = vpop.permute.xlu0 %450
        %v453 = vsel %vm403, %v396, 0
        %v456 = vsel %vm403, %v451, 0
        %458 = vmatprep.subr.bf16.mxu0 0
        %459 = vmatpush1.bf16.xpose.msra.mxu0 %v456
        %460 = vmatprep.subr.bf16.mxu0 0
        %461 = vmatpush1.bf16.xpose.msra.mxu0 0
        %462 = vmatprep.subr.bf16.mxu0 0
        %463 = vmatpush1.bf16.xpose.msra.mxu0 0
        %464 = vmatprep.subr.bf16.mxu0 0
        %465 = vmatpush1.bf16.xpose.msra.mxu0 0
        %466 = vmatprep.subr.bf16.mxu0 0
        %467 = vmatpush1.bf16.xpose.msra.mxu0 0
        %468 = vmatprep.subr.bf16.mxu0 0
        %469 = vmatpush1.bf16.xpose.msra.mxu0 0
        %470 = vmatprep.subr.bf16.mxu0 0
        %471 = vmatpush1.bf16.xpose.msra.mxu0 0
        %472 = vmatprep.subr.bf16.mxu0 0
        %473 = vmatpush1.bf16.xpose.msra.mxu0 0
        %474 = vmatprep.subr.bf16.mxu0 0
        %475 = vmatpush1.bf16.xpose.msra.mxu0 0
        %476 = vmatprep.subr.bf16.mxu0 0
        %477 = vmatpush1.bf16.xpose.msra.mxu0 0
        %478 = vmatprep.subr.bf16.mxu0 0
        %479 = vmatpush1.bf16.xpose.msra.mxu0 0
        %480 = vmatprep.subr.bf16.mxu0 0
        %481 = vmatpush1.bf16.xpose.msra.mxu0 0
        %482 = vmatprep.subr.bf16.mxu0 0
        %483 = vmatpush1.bf16.xpose.msra.mxu0 0
        %484 = vmatprep.subr.bf16.mxu0 0
        %485 = vmatpush1.bf16.xpose.msra.mxu0 0
        %486 = vmatprep.subr.bf16.mxu0 0
        %487 = vmatpush1.bf16.xpose.msra.mxu0 0
        %488 = vmatprep.subr.bf16.mxu0 0
        %489 = vmatpush1.bf16.xpose.msra.mxu0 0
        %490 = vmatprep.mubr.bf16.mxu0 0
        %491 = vmatmul.mubr.bf16.gmra.mrb[0].mxu0 %v453
        %v492 = vpop.f32.mrb[0].mxu0
        %v493 = vadd.f32 0.0, %v492
        %v494 = vpop.f32.mrb[0].mxu0
        %v495 = vpop.f32.mrb[0].mxu0
        %v496 = vpop.f32.mrb[0].mxu0
        %497 = vdwg.mxu0
        %498 = vrot.lane.b32.xlu0 %v398, 96
        %v499 = vpop.permute.xlu0 %498
        %v501 = vsel %vm403, %v398, 0
        %v504 = vsel %vm403, %v499, 0
        %506 = vmatprep.subr.bf16.mxu0 0
        %507 = vmatpush1.bf16.xpose.msra.mxu0 %v504
        %508 = vmatprep.subr.bf16.mxu0 0
        %509 = vmatpush1.bf16.xpose.msra.mxu0 0
        %510 = vmatprep.subr.bf16.mxu0 0
        %511 = vmatpush1.bf16.xpose.msra.mxu0 0
        %512 = vmatprep.subr.bf16.mxu0 0
        %513 = vmatpush1.bf16.xpose.msra.mxu0 0
        %514 = vmatprep.subr.bf16.mxu0 0
        %515 = vmatpush1.bf16.xpose.msra.mxu0 0
        %516 = vmatprep.subr.bf16.mxu0 0
        %517 = vmatpush1.bf16.xpose.msra.mxu0 0
        %518 = vmatprep.subr.bf16.mxu0 0
        %519 = vmatpush1.bf16.xpose.msra.mxu0 0
        %520 = vmatprep.subr.bf16.mxu0 0
        %521 = vmatpush1.bf16.xpose.msra.mxu0 0
        %522 = vmatprep.subr.bf16.mxu0 0
        %523 = vmatpush1.bf16.xpose.msra.mxu0 0
        %524 = vmatprep.subr.bf16.mxu0 0
        %525 = vmatpush1.bf16.xpose.msra.mxu0 0
        %526 = vmatprep.subr.bf16.mxu0 0
        %527 = vmatpush1.bf16.xpose.msra.mxu0 0
        %528 = vmatprep.subr.bf16.mxu0 0
        %529 = vmatpush1.bf16.xpose.msra.mxu0 0
        %530 = vmatprep.subr.bf16.mxu0 0
        %531 = vmatpush1.bf16.xpose.msra.mxu0 0
        %532 = vmatprep.subr.bf16.mxu0 0
        %533 = vmatpush1.bf16.xpose.msra.mxu0 0
        %534 = vmatprep.subr.bf16.mxu0 0
        %535 = vmatpush1.bf16.xpose.msra.mxu0 0
        %536 = vmatprep.subr.bf16.mxu0 0
        %537 = vmatpush1.bf16.xpose.msra.mxu0 0
        %538 = vmatprep.mubr.bf16.mxu0 0
        %539 = vmatmul.mubr.bf16.gmra.mrb[0].mxu0 %v501
        %v540 = vpop.f32.mrb[0].mxu0
        %v541 = vadd.f32 0.0, %v540
        %v542 = vpop.f32.mrb[0].mxu0
        %v543 = vpop.f32.mrb[0].mxu0
        %v544 = vpop.f32.mrb[0].mxu0
        %545 = vdwg.mxu0
        %546 = vrot.lane.b32.xlu0 %v400, 96
        %v547 = vpop.permute.xlu0 %546
        %v549 = vsel %vm403, %v400, 0
        %v552 = vsel %vm403, %v547, 0
        %554 = vmatprep.subr.bf16.mxu0 0
        %555 = vmatpush1.bf16.xpose.msra.mxu0 %v552
        %556 = vmatprep.subr.bf16.mxu0 0
        %557 = vmatpush1.bf16.xpose.msra.mxu0 0
        %558 = vmatprep.subr.bf16.mxu0 0
        %559 = vmatpush1.bf16.xpose.msra.mxu0 0
        %560 = vmatprep.subr.bf16.mxu0 0
        %561 = vmatpush1.bf16.xpose.msra.mxu0 0
        %562 = vmatprep.subr.bf16.mxu0 0
        %563 = vmatpush1.bf16.xpose.msra.mxu0 0
        %564 = vmatprep.subr.bf16.mxu0 0
        %565 = vmatpush1.bf16.xpose.msra.mxu0 0
        %566 = vmatprep.subr.bf16.mxu0 0
        %567 = vmatpush1.bf16.xpose.msra.mxu0 0
        %568 = vmatprep.subr.bf16.mxu0 0
        %569 = vmatpush1.bf16.xpose.msra.mxu0 0
        %570 = vmatprep.subr.bf16.mxu0 0
        %571 = vmatpush1.bf16.xpose.msra.mxu0 0
        %572 = vmatprep.subr.bf16.mxu0 0
        %573 = vmatpush1.bf16.xpose.msra.mxu0 0
        %574 = vmatprep.subr.bf16.mxu0 0
        %575 = vmatpush1.bf16.xpose.msra.mxu0 0
        %576 = vmatprep.subr.bf16.mxu0 0
        %577 = vmatpush1.bf16.xpose.msra.mxu0 0
        %578 = vmatprep.subr.bf16.mxu0 0
        %579 = vmatpush1.bf16.xpose.msra.mxu0 0
        %580 = vmatprep.subr.bf16.mxu0 0
        %581 = vmatpush1.bf16.xpose.msra.mxu0 0
        %582 = vmatprep.subr.bf16.mxu0 0
        %583 = vmatpush1.bf16.xpose.msra.mxu0 0
        %584 = vmatprep.subr.bf16.mxu0 0
        %585 = vmatpush1.bf16.xpose.msra.mxu0 0
        %586 = vmatprep.mubr.bf16.mxu0 0
        %587 = vmatmul.mubr.bf16.gmra.mrb[0].mxu0 %v549
        %v588 = vpop.f32.mrb[0].mxu0
        %v589 = vadd.f32 0.0, %v588
        %v590 = vpop.f32.mrb[0].mxu0
        %v591 = vpop.f32.mrb[0].mxu0
        %v592 = vpop.f32.mrb[0].mxu0
        %593 = vdwg.mxu0
        %v594 = vsel %vm403, %v445, -inf
        %595 = vmax.xlane.f32.xlu0 %v594
        %v596 = vpop.xlane.xlu0 %595
        %v597 = vsel %vm403, %v493, -inf
        %598 = vmax.xlane.f32.xlu0 %v597
        %v599 = vpop.xlane.xlu0 %598
        %v600 = vsel %vm403, %v541, -inf
        %601 = vmax.xlane.f32.xlu0 %v600
        %v602 = vpop.xlane.xlu0 %601
        %v603 = vsel %vm403, %v589, -inf
        %604 = vmax.xlane.f32.xlu0 %v603
        %v605 = vpop.xlane.xlu0 %604
        %v606 = vsub.f32 %v445, %v596
        %v607 = vsub.f32 %v493, %v599
        %v608 = vsub.f32 %v541, %v602
        %v609 = vsub.f32 %v589, %v605
        %v610 = vmul.f32 %v606, 1.442695
        %v611 = vpow.pop %v610
        %v612 = vmul.f32 %v607, 1.442695
        %v613 = vpow.pop %v612
        %v614 = vmul.f32 %v608, 1.442695
        %v615 = vpow.pop %v614
        %v616 = vmul.f32 %v609, 1.442695
        %v617 = vpow.pop %v616
        %v618 = vsel %vm403, %v611, 0.0
        %619 = vadd.xlane.f32.xlu0 %v618
        %v620 = vpop.xlane.xlu0 %619
        %v621 = vsel %vm403, %v613, 0.0
        %622 = vadd.xlane.f32.xlu0 %v621
        %v623 = vpop.xlane.xlu0 %622
        %v624 = vsel %vm403, %v615, 0.0
        %625 = vadd.xlane.f32.xlu0 %v624
        %v626 = vpop.xlane.xlu0 %625
        %v627 = vsel %vm403, %v617, 0.0
        %628 = vadd.xlane.f32.xlu0 %v627
        %v629 = vpop.xlane.xlu0 %628
        %v630 = vrcp.pop %v620
        %v631 = vrcp.pop %v623
        %v632 = vrcp.pop %v626
        %v633 = vrcp.pop %v629
        %v634 = vmul.f32 %v611, %v630
        %v635 = vmul.f32 %v613, %v631
        %v636 = vmul.f32 %v615, %v632
        %v637 = vmul.f32 %v617, %v633
        %v638 = vpack.c.bf16 %v634, %v634
        %v639 = vpack.c.bf16 %v635, %v635
        %v640 = vpack.c.bf16 %v636, %v636
        %v641 = vpack.c.bf16 %v637, %v637
        %642 = vrot.lane.b32.xlu0 %v393, 64
        %v643 = vpop.permute.xlu0 %642
        %v645 = vsel %vm403, %v638, 0
        %vm647 = vcmask 1043456
        %v649 = vsel %vm647, %v643, 0
        %651 = vmatprep.subr.bf16.mxu0 0
        %652 = vmatpush1.bf16.msra.mxu0 %v649
        %653 = vmatprep.subr.bf16.mxu0 0
        %654 = vmatpush1.bf16.msra.mxu0 0
        %655 = vmatprep.subr.bf16.mxu0 0
        %656 = vmatpush1.bf16.msra.mxu0 0
        %657 = vmatprep.subr.bf16.mxu0 0
        %658 = vmatpush1.bf16.msra.mxu0 0
        %659 = vmatprep.subr.bf16.mxu0 0
        %660 = vmatpush1.bf16.msra.mxu0 0
        %661 = vmatprep.subr.bf16.mxu0 0
        %662 = vmatpush1.bf16.msra.mxu0 0
        %663 = vmatprep.subr.bf16.mxu0 0
        %664 = vmatpush1.bf16.msra.mxu0 0
        %665 = vmatprep.subr.bf16.mxu0 0
        %666 = vmatpush1.bf16.msra.mxu0 0
        %667 = vmatprep.subr.bf16.mxu0 0
        %668 = vmatpush1.bf16.msra.mxu0 0
        %669 = vmatprep.subr.bf16.mxu0 0
        %670 = vmatpush1.bf16.msra.mxu0 0
        %671 = vmatprep.subr.bf16.mxu0 0
        %672 = vmatpush1.bf16.msra.mxu0 0
        %673 = vmatprep.subr.bf16.mxu0 0
        %674 = vmatpush1.bf16.msra.mxu0 0
        %675 = vmatprep.subr.bf16.mxu0 0
        %676 = vmatpush1.bf16.msra.mxu0 0
        %677 = vmatprep.subr.bf16.mxu0 0
        %678 = vmatpush1.bf16.msra.mxu0 0
        %679 = vmatprep.subr.bf16.mxu0 0
        %680 = vmatpush1.bf16.msra.mxu0 0
        %681 = vmatprep.subr.bf16.mxu0 0
        %682 = vmatpush1.bf16.msra.mxu0 0
        %683 = vmatprep.mubr.bf16.mxu0 0
        %684 = vmatmul.mubr.bf16.gmra.mrb[0].mxu0 %v645
        %v685 = vpop.f32.mrb[0].mxu0
        %v686 = vadd.f32 0.0, %v685
        %v687 = vpop.f32.mrb[0].mxu0
        %v688 = vpop.f32.mrb[0].mxu0
        %v689 = vpop.f32.mrb[0].mxu0
        %690 = vdwg.mxu0
        %691 = vrot.lane.b32.xlu0 %v396, 64
        %v692 = vpop.permute.xlu0 %691
        %v694 = vsel %vm403, %v639, 0
        %v697 = vsel %vm647, %v692, 0
        %699 = vmatprep.subr.bf16.mxu0 0
        %700 = vmatpush1.bf16.msra.mxu0 %v697
        %701 = vmatprep.subr.bf16.mxu0 0
        %702 = vmatpush1.bf16.msra.mxu0 0
        %703 = vmatprep.subr.bf16.mxu0 0
        %704 = vmatpush1.bf16.msra.mxu0 0
        %705 = vmatprep.subr.bf16.mxu0 0
        %706 = vmatpush1.bf16.msra.mxu0 0
        %707 = vmatprep.subr.bf16.mxu0 0
        %708 = vmatpush1.bf16.msra.mxu0 0
        %709 = vmatprep.subr.bf16.mxu0 0
        %710 = vmatpush1.bf16.msra.mxu0 0
        %711 = vmatprep.subr.bf16.mxu0 0
        %712 = vmatpush1.bf16.msra.mxu0 0
        %713 = vmatprep.subr.bf16.mxu0 0
        %714 = vmatpush1.bf16.msra.mxu0 0
        %715 = vmatprep.subr.bf16.mxu0 0
        %716 = vmatpush1.bf16.msra.mxu0 0
        %717 = vmatprep.subr.bf16.mxu0 0
        %718 = vmatpush1.bf16.msra.mxu0 0
        %719 = vmatprep.subr.bf16.mxu0 0
        %720 = vmatpush1.bf16.msra.mxu0 0
        %721 = vmatprep.subr.bf16.mxu0 0
        %722 = vmatpush1.bf16.msra.mxu0 0
        %723 = vmatprep.subr.bf16.mxu0 0
        %724 = vmatpush1.bf16.msra.mxu0 0
        %725 = vmatprep.subr.bf16.mxu0 0
        %726 = vmatpush1.bf16.msra.mxu0 0
        %727 = vmatprep.subr.bf16.mxu0 0
        %728 = vmatpush1.bf16.msra.mxu0 0
        %729 = vmatprep.subr.bf16.mxu0 0
        %730 = vmatpush1.bf16.msra.mxu0 0
        %731 = vmatprep.mubr.bf16.mxu0 0
        %732 = vmatmul.mubr.bf16.gmra.mrb[0].mxu0 %v694
        %v733 = vpop.f32.mrb[0].mxu0
        %v734 = vadd.f32 0.0, %v733
        %v735 = vpop.f32.mrb[0].mxu0
        %v736 = vpop.f32.mrb[0].mxu0
        %v737 = vpop.f32.mrb[0].mxu0
        %738 = vdwg.mxu0
        %739 = vrot.lane.b32.xlu0 %v398, 64
        %v740 = vpop.permute.xlu0 %739
        %v742 = vsel %vm403, %v640, 0
        %v745 = vsel %vm647, %v740, 0
        %747 = vmatprep.subr.bf16.mxu0 0
        %748 = vmatpush1.bf16.msra.mxu0 %v745
        %749 = vmatprep.subr.bf16.mxu0 0
        %750 = vmatpush1.bf16.msra.mxu0 0
        %751 = vmatprep.subr.bf16.mxu0 0
        %752 = vmatpush1.bf16.msra.mxu0 0
        %753 = vmatprep.subr.bf16.mxu0 0
        %754 = vmatpush1.bf16.msra.mxu0 0
        %755 = vmatprep.subr.bf16.mxu0 0
        %756 = vmatpush1.bf16.msra.mxu0 0
        %757 = vmatprep.subr.bf16.mxu0 0
        %758 = vmatpush1.bf16.msra.mxu0 0
        %759 = vmatprep.subr.bf16.mxu0 0
        %760 = vmatpush1.bf16.msra.mxu0 0
        %761 = vmatprep.subr.bf16.mxu0 0
        %762 = vmatpush1.bf16.msra.mxu0 0
        %763 = vmatprep.subr.bf16.mxu0 0
        %764 = vmatpush1.bf16.msra.mxu0 0
        %765 = vmatprep.subr.bf16.mxu0 0
        %766 = vmatpush1.bf16.msra.mxu0 0
        %767 = vmatprep.subr.bf16.mxu0 0
        %768 = vmatpush1.bf16.msra.mxu0 0
        %769 = vmatprep.subr.bf16.mxu0 0
        %770 = vmatpush1.bf16.msra.mxu0 0
        %771 = vmatprep.subr.bf16.mxu0 0
        %772 = vmatpush1.bf16.msra.mxu0 0
        %773 = vmatprep.subr.bf16.mxu0 0
        %774 = vmatpush1.bf16.msra.mxu0 0
        %775 = vmatprep.subr.bf16.mxu0 0
        %776 = vmatpush1.bf16.msra.mxu0 0
        %777 = vmatprep.subr.bf16.mxu0 0
        %778 = vmatpush1.bf16.msra.mxu0 0
        %779 = vmatprep.mubr.bf16.mxu0 0
        %780 = vmatmul.mubr.bf16.gmra.mrb[0].mxu0 %v742
        %v781 = vpop.f32.mrb[0].mxu0
        %v782 = vadd.f32 0.0, %v781
        %v783 = vpop.f32.mrb[0].mxu0
        %v784 = vpop.f32.mrb[0].mxu0
        %v785 = vpop.f32.mrb[0].mxu0
        %786 = vdwg.mxu0
        %787 = vrot.lane.b32.xlu0 %v400, 64
        %v788 = vpop.permute.xlu0 %787
        %v790 = vsel %vm403, %v641, 0
        %v793 = vsel %vm647, %v788, 0
        %795 = vmatprep.subr.bf16.mxu0 0
        %796 = vmatpush1.bf16.msra.mxu0 %v793
        %797 = vmatprep.subr.bf16.mxu0 0
        %798 = vmatpush1.bf16.msra.mxu0 0
        %799 = vmatprep.subr.bf16.mxu0 0
        %800 = vmatpush1.bf16.msra.mxu0 0
        %801 = vmatprep.subr.bf16.mxu0 0
        %802 = vmatpush1.bf16.msra.mxu0 0
        %803 = vmatprep.subr.bf16.mxu0 0
        %804 = vmatpush1.bf16.msra.mxu0 0
        %805 = vmatprep.subr.bf16.mxu0 0
        %806 = vmatpush1.bf16.msra.mxu0 0
        %807 = vmatprep.subr.bf16.mxu0 0
        %808 = vmatpush1.bf16.msra.mxu0 0
        %809 = vmatprep.subr.bf16.mxu0 0
        %810 = vmatpush1.bf16.msra.mxu0 0
        %811 = vmatprep.subr.bf16.mxu0 0
        %812 = vmatpush1.bf16.msra.mxu0 0
        %813 = vmatprep.subr.bf16.mxu0 0
        %814 = vmatpush1.bf16.msra.mxu0 0
        %815 = vmatprep.subr.bf16.mxu0 0
        %816 = vmatpush1.bf16.msra.mxu0 0
        %817 = vmatprep.subr.bf16.mxu0 0
        %818 = vmatpush1.bf16.msra.mxu0 0
        %819 = vmatprep.subr.bf16.mxu0 0
        %820 = vmatpush1.bf16.msra.mxu0 0
        %821 = vmatprep.subr.bf16.mxu0 0
        %822 = vmatpush1.bf16.msra.mxu0 0
        %823 = vmatprep.subr.bf16.mxu0 0
        %824 = vmatpush1.bf16.msra.mxu0 0
        %825 = vmatprep.subr.bf16.mxu0 0
        %826 = vmatpush1.bf16.msra.mxu0 0
        %827 = vmatprep.mubr.bf16.mxu0 0
        %828 = vmatmul.mubr.bf16.gmra.mrb[0].mxu0 %v790
        %v829 = vpop.f32.mrb[0].mxu0
        %v830 = vadd.f32 0.0, %v829
        %v831 = vpop.f32.mrb[0].mxu0
        %v832 = vpop.f32.mrb[0].mxu0
        %v833 = vpop.f32.mrb[0].mxu0
        %834 = vdwg.mxu0
        %836 = vrot.lane.b32.xlu0 %v734, 8
        %v837 = vpop.permute.xlu0 %836
        %840 = vrot.lane.b32.xlu0 %v782, 16
        %v841 = vpop.permute.xlu0 %840
        %844 = vrot.lane.b32.xlu0 %v830, 24
        %v845 = vpop.permute.xlu0 %844
        %v847 = vsel %vm403, %v686, %v837
        %vm848 = vcmask 130048
        %v849 = vsel %vm848, %v847, %v841
        %vm850 = vcmask 195584
        %v851 = vsel %vm850, %v849, %v845
        %v852 = vpack.c.bf16 %v851, %v851
        %v853 = vld [vmem:[#allocation7] sm:$0xf]
        %v854 = vld [vmem:[#allocation7 + $0x4] sm:$0xf]
        %v855 = vld [vmem:[#allocation7 + $0x8] sm:$0xf]
        %v856 = vld [vmem:[#allocation7 + $0xc] sm:$0xf]
        %v857 = vld [vmem:[%s4] sm:$0x1]
        %v859 = vlaneseq
        %v860 = vshrl.u32 %v859, 7
        %v861 = vsub.s32 0, %v860
        %v862 = vrot.slane %v857, %v861
        %v868 = vunpack.c.l.b16 %v853
        %v869 = vunpack.c.l.b16 %v854
        %v870 = vunpack.c.l.b16 %v855
        %v871 = vunpack.c.l.b16 %v856
        %v872 = vpack.c.b16 %v869, %v868
        %v873 = vpack.c.b16 %v871, %v870
        %v877 = vsel %vm349, %v852, 0
        %879 = vmatprep.subr.bf16.mxu0 0
        %880 = vmatpush1.bf16.msra.mxu0 %v872
        %881 = vmatprep.subr.bf16.mxu0 0
        %882 = vmatpush1.bf16.msra.mxu0 %v873
        %883 = vmatprep.subr.bf16.mxu0 0
        %884 = vmatpush1.bf16.msra.mxu0 0
        %885 = vmatprep.subr.bf16.mxu0 0
        %886 = vmatpush1.bf16.msra.mxu0 0
        %887 = vmatprep.subr.bf16.mxu0 0
        %888 = vmatpush1.bf16.msra.mxu0 0
        %889 = vmatprep.subr.bf16.mxu0 0
        %890 = vmatpush1.bf16.msra.mxu0 0
        %891 = vmatprep.subr.bf16.mxu0 0
        %892 = vmatpush1.bf16.msra.mxu0 0
        %893 = vmatprep.subr.bf16.mxu0 0
        %894 = vmatpush1.bf16.msra.mxu0 0
        %895 = vmatprep.subr.bf16.mxu0 0
        %896 = vmatpush1.bf16.msra.mxu0 0
        %897 = vmatprep.subr.bf16.mxu0 0
        %898 = vmatpush1.bf16.msra.mxu0 0
        %899 = vmatprep.subr.bf16.mxu0 0
        %900 = vmatpush1.bf16.msra.mxu0 0
        %901 = vmatprep.subr.bf16.mxu0 0
        %902 = vmatpush1.bf16.msra.mxu0 0
        %903 = vmatprep.subr.bf16.mxu0 0
        %904 = vmatpush1.bf16.msra.mxu0 0
        %905 = vmatprep.subr.bf16.mxu0 0
        %906 = vmatpush1.bf16.msra.mxu0 0
        %907 = vmatprep.subr.bf16.mxu0 0
        %908 = vmatpush1.bf16.msra.mxu0 0
        %909 = vmatprep.subr.bf16.mxu0 0
        %910 = vmatpush1.bf16.msra.mxu0 0
        %911 = vmatprep.mubr.bf16.mxu0 0
        %912 = vmatmul.mubr.bf16.gmra.mrb[0].mxu0 %v877
        %v913 = vpop.f32.mrb[0].mxu0
        %v914 = vadd.f32 %v862, %v913
        %v915 = vpop.f32.mrb[0].mxu0
        %v916 = vpop.f32.mrb[0].mxu0
        %v917 = vpop.f32.mrb[0].mxu0
        %918 = vdwg.mxu0
        %v919 = vadd.f32 %v914, %v324
        %v920 = vld [vmem:[%s5] sm:$0x1]
        %v921 = vld [vmem:[%s6] sm:$0x1]
        %v922 = vsel %vm349, %v919, 0.0
        %923 = vadd.xlane.f32.xlu0 %v922
        %v924 = vpop.xlane.xlu0 %923
        %v925 = vrcp.pop 32.0
        %v926 = vmul.f32 %v924, %v925
        %v927 = vsub.f32 %v919, %v926
        %v928 = vmul.f32 %v927, %v927
        %v929 = vsel %vm349, %v928, 0.0
        %930 = vadd.xlane.f32.xlu0 %v929
        %v931 = vpop.xlane.xlu0 %930
        %v932 = vmul.f32 %v931, %v925
        %v933 = vadd.f32 %v932, 1e-12
        %v934 = vrsqrt.pop %v933
        %v935 = vmul.f32 %v927, %v934
        %v937 = vlaneseq
        %v938 = vshrl.u32 %v937, 7
        %v939 = vsub.s32 0, %v938
        %v940 = vrot.slane %v920, %v939
        %v942 = vmul.f32 %v935, %v940
        %v944 = vlaneseq
        %v945 = vshrl.u32 %v944, 7
        %v946 = vsub.s32 0, %v945
        %v947 = vrot.slane %v921, %v946
        %v949 = vadd.f32 %v942, %v947
        %950 = vst.msk [vmem:[%s322] sm:$0xff] %vm349, %v949
        %s951 = sand.u32 %s185, 1
        %s952 = scalar_lea.sflag [#allocation4], %s951
        %s953 = sand.u32 %s185, 1
        %s954 = smul.addr %s953, 8
        %s955 = scalar_lea.vmem [#allocation8], %s954
        // Predicated region
        $region61: #{tpu_custom_call.1} parent=47 // pred_check
          %p956 = pneg %p195
        $region62: #{tpu_custom_call.1} parent=47 // pred_check_branch
          %958 = sbr.rel (%p956) target = $region64
        $region63: #{tpu_custom_call.1} parent=47 // pred_region
          %s960 = ssub.s32 128, 128
          %961 = vsyncadd %s952, %s960
          %s962 = smul.addr %s25, 128
          %s963 = scalar_lea.hbm %s7, %s962
          %s965 = sshll.u32 %s955, 4
          %s966 = int_to_ptr.vmem [resolvable:$true] %s965
          %968 = dma.vmem_to_hbm [thread:$0]  %s966, 128, %s963, %s952
        $region64: #{tpu_custom_call.1} parent=47 // pred_fallthru
          _
      $region48: #{tpu_custom_call.1} parent=5 // pred_fallthru
        _
      %p969 = scmp.le.s32.totalorder 2, %s20
      // Predicated region
      $region65: #{tpu_custom_call.1} parent=5 // pred_check
        %p970 = pneg %p969
      $region66: #{tpu_custom_call.1} parent=5 // pred_check_branch
        %972 = sbr.rel (%p970) target = $region68
      $region67: #{tpu_custom_call.1} parent=5 // pred_region
        %s973 = ssub.s32 %s20, 2
        // Predicated region
        $region69: #{tpu_custom_call.1} parent=67 // pred_check
          %p974 = pneg %p201
        $region70: #{tpu_custom_call.1} parent=67 // pred_check_branch
          %976 = sbr.rel (%p974) target = $region72
        $region71: #{tpu_custom_call.1} parent=67 // pred_region
          %s977 = sand.u32 %s186, 1
          %s978 = scalar_lea.sflag [#allocation4], %s977
          %s979 = sand.u32 %s186, 1
          %s980 = smul.addr %s979, 8
          %s981 = scalar_lea.vmem [#allocation8], %s980
          %982 = dma.done %s978, 128
        $region72: #{tpu_custom_call.1} parent=67 // pred_fallthru
          _
      $region68: #{tpu_custom_call.1} parent=5 // pred_fallthru
        _
    $region6: #{tpu_custom_call.1} parent=1 // loop_footer
      %s24 = sadd.s32 1, %s20
    $region7: #{tpu_custom_call.1} parent=1 // loop_footer_branch
      %19 = sbr.rel target = $region3
    $region8: #{tpu_custom_call.1} parent=1 // loop_exit
      _
    %983 = vsyncpa [#allocation3], 1
    %s984 = scalar_lea.sflag [#allocation3], 1
    %985 = vsyncpa %s984, 1
    %986 = vsyncpa [#allocation6], 1
    %987 = vsyncpa [#allocation4], 1
    %s988 = scalar_lea.sflag [#allocation4], 1
    %989 = vsyncpa %s988, 1

</llo_original>
